<compile_context>
chip_gen: v5e
topology: v5e:2x2
jax: 0.10.0
libtpu: 0.0.40
codegen_flags: <defaults>
</compile_context>

<pallas_src>
import functools

import jax
import jax.numpy as jnp
from jax import lax
from jax.experimental import pallas as pl
from jax.experimental.pallas import tpu as pltpu


def _round_up(x, m):
    return ((x + m - 1) // m) * m


# ---------------------------------------------------------------------------
# Pallas kernel: whole sequence in one invocation (no grid).
#   Inputs (all f32, VMEM-resident):
#     ci    : (T*Bp, Ncat+Nin)  [category | input] rows, time folded into rows
#     h0    : (Bp, Hp)          initial hidden (padded)
#     wci_h : (Ncat+Nin, Hp)    input_to_hidden rows for (category|input)
#     wci_o : (Ncat+Nin, Op)    input_to_output rows for (category|input)
#     b1,b2 : (1, Hp), (1, Op)
#     wh_h  : (Hp, Hp)          input_to_hidden rows for hidden
#     wh_o  : (Hp, Op)          input_to_output rows for hidden
#     w3h   : (Hp, Op)          output_to_output rows for hidden_new
#     w3o   : (Op, Op)          output_to_output rows for output
#     b3    : (1, Op)           padded columns hold -1e30 (softmax mask folded)
#   Outputs:
#     out   : (T*Bp, Op)        per-step log-probs
#     hid   : (Bp, Hp)          final hidden
#   Scratch:
#     xh, xo, hprev : VMEM activation slabs
# ---------------------------------------------------------------------------
def _rnn_kernel(ci_ref, h0_ref, wcih_ref, wcio_ref, b1_ref, b2_ref,
                whh_ref, who_ref, w3h_ref, w3o_ref, b3_ref,
                out_ref, hid_ref,
                xh_ref, xo_ref, hprev_ref, *, T, Bp):
    # ---- Phase 1: time-independent input projection, batched over T*Bp rows.
    ci = ci_ref[...]
    xh_ref[...] = (jnp.dot(ci, wcih_ref[...], preferred_element_type=jnp.float32)
                   + b1_ref[...])
    xo_ref[...] = (jnp.dot(ci, wcio_ref[...], preferred_element_type=jnp.float32)
                   + b2_ref[...])

    # ---- Phase 2: serial recurrence — only h @ Wh_h on the critical path.
    whh = whh_ref[...]                      # hoisted: loaded once, loop-invariant

    def step(t, h):
        r = pl.multiple_of(t * Bp, Bp)
        hprev_ref[pl.ds(r, Bp), :] = h      # record h_{t} (input hidden of step t)
        return (xh_ref[pl.ds(r, Bp), :]
                + jnp.dot(h, whh, preferred_element_type=jnp.float32))

    h_final = lax.fori_loop(0, T, step, h0_ref[...], unroll=True)
    hid_ref[...] = h_final

    # ---- Phase 3: output head, batched over T*Bp rows (off the serial path).
    hprev = hprev_ref[...]
    hnew = xh_ref[...] + jnp.dot(hprev, whh, preferred_element_type=jnp.float32)
    preo = xo_ref[...] + jnp.dot(hprev, who_ref[...],
                                 preferred_element_type=jnp.float32)
    # output_to_output(cat(hidden_new, output)) folded into two matmuls;
    # padded logit columns are masked via -1e30 already folded into b3.
    logits = (jnp.dot(hnew, w3h_ref[...], preferred_element_type=jnp.float32)
              + jnp.dot(preo, w3o_ref[...], preferred_element_type=jnp.float32)
              + b3_ref[...])

    # Dropout(p=0.1): identity in eval/inference mode (see TODO at top).

    # Numerically stable LogSoftmax over the feature (lane) axis.
    m = jnp.max(logits, axis=1, keepdims=True)
    shifted = logits - m
    lse = jnp.log(jnp.sum(jnp.exp(shifted), axis=1, keepdims=True))
    out_ref[...] = shifted - lse


# ---------------------------------------------------------------------------
# Wrapper: run T timesteps in a single gridless pallas_call.
#   cat_seq : (T, B, n_categories)
#   inp_seq : (T, B, input_size)
#   hidden0 : (B, hidden_size)
# Returns (log_probs (T, B, output_size), final_hidden (B, hidden_size)).
# ---------------------------------------------------------------------------
def rnn_sequence_forward(kparams, cat_seq, inp_seq, hidden0, output_size):
    T, B, Ncat = cat_seq.shape
    Nin = inp_seq.shape[2]
    H = hidden0.shape[1]
    O = output_size

    Hp = kparams["wh_h"].shape[0]
    Op = kparams["w3o"].shape[0]
    Bp = max(8, _round_up(B, 8))

    # [category | input] concatenated once; batch padded to 8 sublanes; time
    # folded into the row axis so phase 1 / phase 3 are batched with M = T*Bp.
    ci = jnp.concatenate([cat_seq.astype(jnp.float32),
                          inp_seq.astype(jnp.float32)], axis=2)
    ci = jnp.pad(ci, ((0, 0), (0, Bp - B), (0, 0))).reshape(T * Bp, Ncat + Nin)
    h0 = jnp.pad(hidden0.astype(jnp.float32), ((0, Bp - B), (0, Hp - H)))

    kernel = functools.partial(_rnn_kernel, T=T, Bp=Bp)

    out, hid = pl.pallas_call(
        kernel,
        out_shape=(jax.ShapeDtypeStruct((T * Bp, Op), jnp.float32),
                   jax.ShapeDtypeStruct((Bp, Hp), jnp.float32)),
        scratch_shapes=[pltpu.VMEM((T * Bp, Hp), jnp.float32),   # xh
                        pltpu.VMEM((T * Bp, Op), jnp.float32),   # xo
                        pltpu.VMEM((T * Bp, Hp), jnp.float32)],  # hprev
        # Alias the (internal, padded) initial-hidden buffer with the final
        # hidden output: no extra HBM state buffer.
        input_output_aliases={1: 1},
    )(ci, h0,
      kparams["wci_h"], kparams["wci_o"], kparams["b1"], kparams["b2"],
      kparams["wh_h"], kparams["wh_o"],
      kparams["w3h"], kparams["w3o"], kparams["b3"])

    out = out.reshape(T, Bp, Op)
    return out[:, :B, :O], hid[:B, :H]


def rnn_forward(kparams, category, inp, hidden, output_size):
    """Single-step API, equivalent to RNN.forward(category, input, hidden)."""
    out_seq, new_hidden = rnn_sequence_forward(
        kparams, category[None], inp[None], hidden, output_size)
    return out_seq[0], new_hidden


# ---------------------------------------------------------------------------
# Parameter init (mimics nn.Linear uniform init; weights stored as (in, out)).
# ---------------------------------------------------------------------------
def init_params(key, input_size, hidden_size, output_size, n_categories):
    C = n_categories + input_size + hidden_size
    H, O = hidden_size, output_size
    keys = jax.random.split(key, 6)

    def linear(kw, kb, fan_in, fan_out):
        bound = 1.0 / jnp.sqrt(jnp.float32(fan_in))
        w = jax.random.uniform(kw, (fan_in, fan_out), jnp.float32, -bound, bound)
        b = jax.random.uniform(kb, (1, fan_out), jnp.float32, -bound, bound)
        return w, b

    w1, b1 = linear(keys[0], keys[1], C, H)        # input_to_hidden
    w2, b2 = linear(keys[2], keys[3], C, O)        # input_to_output
    w3, b3 = linear(keys[4], keys[5], H + O, O)    # output_to_output
    return {"w1": w1, "b1": b1, "w2": w2, "b2": b2, "w3": w3, "b3": b3}


# ---------------------------------------------------------------------------
# Pack parameters for the kernel: split w1/w2 rows into (category|input) vs
# hidden blocks (so neither torch.cat materializes), split w3 rows into the
# hidden_new / output halves (folds the second cat), zero-pad H/O to 128
# lanes, and fold the padded-logit softmax mask into b3 (-1e30).
# NOTE: bf16 weight storage (keep f32 accumulation) is a v6e/v7x-only knob;
# keep f32 on v5e and for tight numerical parity with the f32 reference.
# ---------------------------------------------------------------------------
def pack_params(params, n_categories, input_size, hidden_size, output_size):
    H, O = hidden_size, output_size
    Hp, Op = _round_up(H, 128), _round_up(O, 128)
    Nci = n_categories + input_size

    w1, b1 = params["w1"], params["b1"]            # (C, H), (1, H)
    w2, b2 = params["w2"], params["b2"]            # (C, O), (1, O)
    w3, b3 = params["w3"], params["b3"]            # (H+O, O), (1, O)

    w1p = jnp.pad(w1, ((0, 0), (0, Hp - H)))       # (C, Hp)
    w2p = jnp.pad(w2, ((0, 0), (0, Op - O)))       # (C, Op)

    wci_h = w1p[:Nci]                              # (Nci, Hp)
    wci_o = w2p[:Nci]                              # (Nci, Op)
    wh_h = jnp.pad(w1p[Nci:], ((0, Hp - H), (0, 0)))   # (Hp, Hp)
    wh_o = jnp.pad(w2p[Nci:], ((0, Hp - H), (0, 0)))   # (Hp, Op)

    b1p = jnp.pad(b1, ((0, 0), (0, Hp - H)))       # (1, Hp)
    b2p = jnp.pad(b2, ((0, 0), (0, Op - O)))       # (1, Op)

    w3h = jnp.pad(w3[:H], ((0, Hp - H), (0, Op - O)))  # (Hp, Op)
    w3o = jnp.pad(w3[H:], ((0, Op - O), (0, Op - O)))  # (Op, Op)
    # Fold the padded-logit mask into the bias: padded columns -> -1e30.
    b3p = jnp.concatenate(
        [b3, jnp.full((1, Op - O), -1e30, jnp.float32)], axis=1)   # (1, Op)

    f32 = lambda a: a.astype(jnp.float32)
    return {"wci_h": f32(wci_h), "wci_o": f32(wci_o),
            "b1": f32(b1p), "b2": f32(b2p),
            "wh_h": f32(wh_h), "wh_o": f32(wh_o),
            "w3h": f32(w3h), "w3o": f32(w3o), "b3": f32(b3p)}


# ---------------------------------------------------------------------------
# Pure-JAX reference (mirrors the PyTorch module, eval mode).
# ---------------------------------------------------------------------------
def rnn_forward_ref(params, category, inp, hidden):
    xc = jnp.concatenate([category, inp, hidden], axis=1)
    h = xc @ params["w1"] + params["b1"]
    o = xc @ params["w2"] + params["b2"]
    o2 = jnp.concatenate([h, o], axis=1) @ params["w3"] + params["b3"]
    return jax.nn.log_softmax(o2, axis=1), h


def rnn_sequence_ref(params, cat_seq, inp_seq, hidden0):
    outs, h = [], hidden0
    for t in range(cat_seq.shape[0]):
        o, h = rnn_forward_ref(params, cat_seq[t], inp_seq[t], h)
        outs.append(o)
    return jnp.stack(outs, axis=0), h


if __name__ == "__main__":
    # Small shapes consistent with the module's forward.
    B, n_categories, input_size, hidden_size, output_size = 2, 4, 8, 32, 16
    T = 8   # sequence length folded into one kernel launch

    key = jax.random.PRNGKey(0)
    k_par, k_cat, k_in = jax.random.split(key, 3)

    params = init_params(k_par, input_size, hidden_size, output_size, n_categories)
    kparams = pack_params(params, n_categories, input_size, hidden_size, output_size)

    cat_seq = jax.random.normal(k_cat, (T, B, n_categories), jnp.float32)
    inp_seq = jax.random.normal(k_in, (T, B, input_size), jnp.float32)
    hidden0 = jnp.zeros((B, hidden_size), jnp.float32)

    # Reference (computed first; the kernel only donates its internal padded copy).
    ref_out_seq, ref_hidden = rnn_sequence_ref(params, cat_seq, inp_seq, hidden0)

    # Full-sequence kernel: one pallas_call for all T steps.
    out_seq, hid_final = rnn_sequence_forward(
        kparams, cat_seq, inp_seq, hidden0, output_size)
    out_seq, hid_final = jax.block_until_ready((out_seq, hid_final))

    assert out_seq.shape == (T, B, output_size)
    assert hid_final.shape == (B, hidden_size)
    assert jnp.allclose(out_seq, ref_out_seq, atol=1e-4, rtol=1e-4)
    assert jnp.allclose(hid_final, ref_hidden, atol=1e-4, rtol=1e-4)

    # Single-step API, matching RNN.forward(category, input, hidden) exactly.
    out1, hid1 = rnn_forward(kparams, cat_seq[0], inp_seq[0], hidden0, output_size)
    out1, hid1 = jax.block_until_ready((out1, hid1))
    r_out1, r_hid1 = rnn_forward_ref(params, cat_seq[0], inp_seq[0], hidden0)
    assert jnp.allclose(out1, r_out1, atol=1e-4, rtol=1e-4)
    assert jnp.allclose(hid1, r_hid1, atol=1e-4, rtol=1e-4)

    print("KERNEL_OK")
</pallas_src>

<mosaic_0001>
module attributes {stable_mosaic.version = 11 : i64} {
  func.func @_rnn_kernel(%arg0: memref<64x12xf32, #tpu.memory_space<vmem>>, %arg1: memref<8x128xf32, #tpu.memory_space<vmem>>, %arg2: memref<12x128xf32, #tpu.memory_space<vmem>>, %arg3: memref<12x128xf32, #tpu.memory_space<vmem>>, %arg4: memref<1x128xf32, #tpu.memory_space<vmem>>, %arg5: memref<1x128xf32, #tpu.memory_space<vmem>>, %arg6: memref<128x128xf32, #tpu.memory_space<vmem>>, %arg7: memref<128x128xf32, #tpu.memory_space<vmem>>, %arg8: memref<128x128xf32, #tpu.memory_space<vmem>>, %arg9: memref<128x128xf32, #tpu.memory_space<vmem>>, %arg10: memref<1x128xf32, #tpu.memory_space<vmem>>, %arg11: memref<64x128xf32, #tpu.memory_space<vmem>>, %arg12: memref<8x128xf32, #tpu.memory_space<vmem>>, %arg13: memref<64x128xf32, #tpu.memory_space<vmem>>, %arg14: memref<64x128xf32, #tpu.memory_space<vmem>>, %arg15: memref<64x128xf32, #tpu.memory_space<vmem>>) attributes {dimension_semantics = [], scalar_prefetch = 0 : i64, scratch_operands = 3 : i64, tpu.core_type = #tpu.core_type<tc>} {
    %c0 = arith.constant 0 : index
    %c0_0 = arith.constant 0 : index
    %0 = vector.load %arg0[%c0, %c0_0] : memref<64x12xf32, #tpu.memory_space<vmem>>, vector<64x12xf32>
    %c0_1 = arith.constant 0 : index
    %c0_2 = arith.constant 0 : index
    %1 = vector.load %arg2[%c0_1, %c0_2] : memref<12x128xf32, #tpu.memory_space<vmem>>, vector<12x128xf32>
    %cst = arith.constant dense<0.000000e+00> : vector<64x128xf32>
    %2 = tpu.matmul %0, %1, %cst {dimension_numbers = #tpu.dot_dimension_numbers<[1], [0], [0], [1], [0, 0, 1, 1], [], []>} : vector<64x12xf32>, vector<12x128xf32>, vector<64x128xf32> -> vector<64x128xf32>
    %c0_3 = arith.constant 0 : index
    %c0_4 = arith.constant 0 : index
    %3 = vector.load %arg4[%c0_3, %c0_4] : memref<1x128xf32, #tpu.memory_space<vmem>>, vector<1x128xf32>
    %4 = vector.broadcast %3 : vector<1x128xf32> to vector<64x128xf32>
    %5 = arith.addf %2, %4 : vector<64x128xf32>
    %c0_5 = arith.constant 0 : index
    %c0_6 = arith.constant 0 : index
    %6 = vector.load %arg13[%c0_5, %c0_6] : memref<64x128xf32, #tpu.memory_space<vmem>>, vector<64x128xf32>
    tpu.vector_store %arg13[%c0_5, %c0_6], %5 {strides = array<i32>} : memref<64x128xf32, #tpu.memory_space<vmem>>, vector<64x128xf32>,
    %c0_7 = arith.constant 0 : index
    %c0_8 = arith.constant 0 : index
    %7 = vector.load %arg3[%c0_7, %c0_8] : memref<12x128xf32, #tpu.memory_space<vmem>>, vector<12x128xf32>
    %cst_9 = arith.constant dense<0.000000e+00> : vector<64x128xf32>
    %8 = tpu.matmul %0, %7, %cst_9 {dimension_numbers = #tpu.dot_dimension_numbers<[1], [0], [0], [1], [0, 0, 1, 1], [], []>} : vector<64x12xf32>, vector<12x128xf32>, vector<64x128xf32> -> vector<64x128xf32>
    %c0_10 = arith.constant 0 : index
    %c0_11 = arith.constant 0 : index
    %9 = vector.load %arg5[%c0_10, %c0_11] : memref<1x128xf32, #tpu.memory_space<vmem>>, vector<1x128xf32>
    %10 = vector.broadcast %9 : vector<1x128xf32> to vector<64x128xf32>
    %11 = arith.addf %8, %10 : vector<64x128xf32>
    %c0_12 = arith.constant 0 : index
    %c0_13 = arith.constant 0 : index
    %12 = vector.load %arg14[%c0_12, %c0_13] : memref<64x128xf32, #tpu.memory_space<vmem>>, vector<64x128xf32>
    tpu.vector_store %arg14[%c0_12, %c0_13], %11 {strides = array<i32>} : memref<64x128xf32, #tpu.memory_space<vmem>>, vector<64x128xf32>,
    %c0_14 = arith.constant 0 : index
    %c0_15 = arith.constant 0 : index
    %13 = vector.load %arg6[%c0_14, %c0_15] : memref<128x128xf32, #tpu.memory_space<vmem>>, vector<128x128xf32>
    %c0_16 = arith.constant 0 : index
    %c0_17 = arith.constant 0 : index
    %14 = vector.load %arg1[%c0_16, %c0_17] : memref<8x128xf32, #tpu.memory_space<vmem>>, vector<8x128xf32>
    %c0_i32 = arith.constant 0 : i32
    %c8_i32 = arith.constant 8 : i32
    %15 = arith.muli %c0_i32, %c8_i32 : i32
    %16 = tpu.assume_multiple %15, 8 : i32
    %17 = arith.index_cast %16 : i32 to index
    %c0_18 = arith.constant 0 : index
    %18 = vector.load %arg15[%17, %c0_18] : memref<64x128xf32, #tpu.memory_space<vmem>>, vector<8x128xf32>
    tpu.vector_store %arg15[%17, %c0_18], %14 {strides = array<i32>} : memref<64x128xf32, #tpu.memory_space<vmem>>, vector<8x128xf32>,
    %19 = arith.index_cast %16 : i32 to index
    %c0_19 = arith.constant 0 : index
    %20 = vector.load %arg13[%19, %c0_19] : memref<64x128xf32, #tpu.memory_space<vmem>>, vector<8x128xf32>
    %cst_20 = arith.constant dense<0.000000e+00> : vector<8x128xf32>
    %21 = tpu.matmul %14, %13, %cst_20 {dimension_numbers = #tpu.dot_dimension_numbers<[1], [0], [0], [1], [0, 0, 1, 1], [], []>} : vector<8x128xf32>, vector<128x128xf32>, vector<8x128xf32> -> vector<8x128xf32>
    %22 = arith.addf %20, %21 : vector<8x128xf32>
    %c1_i32 = arith.constant 1 : i32
    %c8_i32_21 = arith.constant 8 : i32
    %23 = arith.muli %c1_i32, %c8_i32_21 : i32
    %24 = tpu.assume_multiple %23, 8 : i32
    %25 = arith.index_cast %24 : i32 to index
    %c0_22 = arith.constant 0 : index
    %26 = vector.load %arg15[%25, %c0_22] : memref<64x128xf32, #tpu.memory_space<vmem>>, vector<8x128xf32>
    tpu.vector_store %arg15[%25, %c0_22], %22 {strides = array<i32>} : memref<64x128xf32, #tpu.memory_space<vmem>>, vector<8x128xf32>,
    %27 = arith.index_cast %24 : i32 to index
    %c0_23 = arith.constant 0 : index
    %28 = vector.load %arg13[%27, %c0_23] : memref<64x128xf32, #tpu.memory_space<vmem>>, vector<8x128xf32>
    %cst_24 = arith.constant dense<0.000000e+00> : vector<8x128xf32>
    %29 = tpu.matmul %22, %13, %cst_24 {dimension_numbers = #tpu.dot_dimension_numbers<[1], [0], [0], [1], [0, 0, 1, 1], [], []>} : vector<8x128xf32>, vector<128x128xf32>, vector<8x128xf32> -> vector<8x128xf32>
    %30 = arith.addf %28, %29 : vector<8x128xf32>
    %c2_i32 = arith.constant 2 : i32
    %c8_i32_25 = arith.constant 8 : i32
    %31 = arith.muli %c2_i32, %c8_i32_25 : i32
    %32 = tpu.assume_multiple %31, 8 : i32
    %33 = arith.index_cast %32 : i32 to index
    %c0_26 = arith.constant 0 : index
    %34 = vector.load %arg15[%33, %c0_26] : memref<64x128xf32, #tpu.memory_space<vmem>>, vector<8x128xf32>
    tpu.vector_store %arg15[%33, %c0_26], %30 {strides = array<i32>} : memref<64x128xf32, #tpu.memory_space<vmem>>, vector<8x128xf32>,
    %35 = arith.index_cast %32 : i32 to index
    %c0_27 = arith.constant 0 : index
    %36 = vector.load %arg13[%35, %c0_27] : memref<64x128xf32, #tpu.memory_space<vmem>>, vector<8x128xf32>
    %cst_28 = arith.constant dense<0.000000e+00> : vector<8x128xf32>
    %37 = tpu.matmul %30, %13, %cst_28 {dimension_numbers = #tpu.dot_dimension_numbers<[1], [0], [0], [1], [0, 0, 1, 1], [], []>} : vector<8x128xf32>, vector<128x128xf32>, vector<8x128xf32> -> vector<8x128xf32>
    %38 = arith.addf %36, %37 : vector<8x128xf32>
    %c3_i32 = arith.constant 3 : i32
    %c8_i32_29 = arith.constant 8 : i32
    %39 = arith.muli %c3_i32, %c8_i32_29 : i32
    %40 = tpu.assume_multiple %39, 8 : i32
    %41 = arith.index_cast %40 : i32 to index
    %c0_30 = arith.constant 0 : index
    %42 = vector.load %arg15[%41, %c0_30] : memref<64x128xf32, #tpu.memory_space<vmem>>, vector<8x128xf32>
    tpu.vector_store %arg15[%41, %c0_30], %38 {strides = array<i32>} : memref<64x128xf32, #tpu.memory_space<vmem>>, vector<8x128xf32>,
    %43 = arith.index_cast %40 : i32 to index
    %c0_31 = arith.constant 0 : index
    %44 = vector.load %arg13[%43, %c0_31] : memref<64x128xf32, #tpu.memory_space<vmem>>, vector<8x128xf32>
    %cst_32 = arith.constant dense<0.000000e+00> : vector<8x128xf32>
    %45 = tpu.matmul %38, %13, %cst_32 {dimension_numbers = #tpu.dot_dimension_numbers<[1], [0], [0], [1], [0, 0, 1, 1], [], []>} : vector<8x128xf32>, vector<128x128xf32>, vector<8x128xf32> -> vector<8x128xf32>
    %46 = arith.addf %44, %45 : vector<8x128xf32>
    %c4_i32 = arith.constant 4 : i32
    %c8_i32_33 = arith.constant 8 : i32
    %47 = arith.muli %c4_i32, %c8_i32_33 : i32
    %48 = tpu.assume_multiple %47, 8 : i32
    %49 = arith.index_cast %48 : i32 to index
    %c0_34 = arith.constant 0 : index
    %50 = vector.load %arg15[%49, %c0_34] : memref<64x128xf32, #tpu.memory_space<vmem>>, vector<8x128xf32>
    tpu.vector_store %arg15[%49, %c0_34], %46 {strides = array<i32>} : memref<64x128xf32, #tpu.memory_space<vmem>>, vector<8x128xf32>,
    %51 = arith.index_cast %48 : i32 to index
    %c0_35 = arith.constant 0 : index
    %52 = vector.load %arg13[%51, %c0_35] : memref<64x128xf32, #tpu.memory_space<vmem>>, vector<8x128xf32>
    %cst_36 = arith.constant dense<0.000000e+00> : vector<8x128xf32>
    %53 = tpu.matmul %46, %13, %cst_36 {dimension_numbers = #tpu.dot_dimension_numbers<[1], [0], [0], [1], [0, 0, 1, 1], [], []>} : vector<8x128xf32>, vector<128x128xf32>, vector<8x128xf32> -> vector<8x128xf32>
    %54 = arith.addf %52, %53 : vector<8x128xf32>
    %c5_i32 = arith.constant 5 : i32
    %c8_i32_37 = arith.constant 8 : i32
    %55 = arith.muli %c5_i32, %c8_i32_37 : i32
    %56 = tpu.assume_multiple %55, 8 : i32
    %57 = arith.index_cast %56 : i32 to index
    %c0_38 = arith.constant 0 : index
    %58 = vector.load %arg15[%57, %c0_38] : memref<64x128xf32, #tpu.memory_space<vmem>>, vector<8x128xf32>
    tpu.vector_store %arg15[%57, %c0_38], %54 {strides = array<i32>} : memref<64x128xf32, #tpu.memory_space<vmem>>, vector<8x128xf32>,
    %59 = arith.index_cast %56 : i32 to index
    %c0_39 = arith.constant 0 : index
    %60 = vector.load %arg13[%59, %c0_39] : memref<64x128xf32, #tpu.memory_space<vmem>>, vector<8x128xf32>
    %cst_40 = arith.constant dense<0.000000e+00> : vector<8x128xf32>
    %61 = tpu.matmul %54, %13, %cst_40 {dimension_numbers = #tpu.dot_dimension_numbers<[1], [0], [0], [1], [0, 0, 1, 1], [], []>} : vector<8x128xf32>, vector<128x128xf32>, vector<8x128xf32> -> vector<8x128xf32>
    %62 = arith.addf %60, %61 : vector<8x128xf32>
    %c6_i32 = arith.constant 6 : i32
    %c8_i32_41 = arith.constant 8 : i32
    %63 = arith.muli %c6_i32, %c8_i32_41 : i32
    %64 = tpu.assume_multiple %63, 8 : i32
    %65 = arith.index_cast %64 : i32 to index
    %c0_42 = arith.constant 0 : index
    %66 = vector.load %arg15[%65, %c0_42] : memref<64x128xf32, #tpu.memory_space<vmem>>, vector<8x128xf32>
    tpu.vector_store %arg15[%65, %c0_42], %62 {strides = array<i32>} : memref<64x128xf32, #tpu.memory_space<vmem>>, vector<8x128xf32>,
    %67 = arith.index_cast %64 : i32 to index
    %c0_43 = arith.constant 0 : index
    %68 = vector.load %arg13[%67, %c0_43] : memref<64x128xf32, #tpu.memory_space<vmem>>, vector<8x128xf32>
    %cst_44 = arith.constant dense<0.000000e+00> : vector<8x128xf32>
    %69 = tpu.matmul %62, %13, %cst_44 {dimension_numbers = #tpu.dot_dimension_numbers<[1], [0], [0], [1], [0, 0, 1, 1], [], []>} : vector<8x128xf32>, vector<128x128xf32>, vector<8x128xf32> -> vector<8x128xf32>
    %70 = arith.addf %68, %69 : vector<8x128xf32>
    %c7_i32 = arith.constant 7 : i32
    %c8_i32_45 = arith.constant 8 : i32
    %71 = arith.muli %c7_i32, %c8_i32_45 : i32
    %72 = tpu.assume_multiple %71, 8 : i32
    %73 = arith.index_cast %72 : i32 to index
    %c0_46 = arith.constant 0 : index
    %74 = vector.load %arg15[%73, %c0_46] : memref<64x128xf32, #tpu.memory_space<vmem>>, vector<8x128xf32>
    tpu.vector_store %arg15[%73, %c0_46], %70 {strides = array<i32>} : memref<64x128xf32, #tpu.memory_space<vmem>>, vector<8x128xf32>,
    %75 = arith.index_cast %72 : i32 to index
    %c0_47 = arith.constant 0 : index
    %76 = vector.load %arg13[%75, %c0_47] : memref<64x128xf32, #tpu.memory_space<vmem>>, vector<8x128xf32>
    %cst_48 = arith.constant dense<0.000000e+00> : vector<8x128xf32>
    %77 = tpu.matmul %70, %13, %cst_48 {dimension_numbers = #tpu.dot_dimension_numbers<[1], [0], [0], [1], [0, 0, 1, 1], [], []>} : vector<8x128xf32>, vector<128x128xf32>, vector<8x128xf32> -> vector<8x128xf32>
    %78 = arith.addf %76, %77 : vector<8x128xf32>
    %c8_i32_49 = arith.constant 8 : i32
    %c0_50 = arith.constant 0 : index
    %c0_51 = arith.constant 0 : index
    %79 = vector.load %arg12[%c0_50, %c0_51] : memref<8x128xf32, #tpu.memory_space<vmem>>, vector<8x128xf32>
    tpu.vector_store %arg12[%c0_50, %c0_51], %78 {strides = array<i32>} : memref<8x128xf32, #tpu.memory_space<vmem>>, vector<8x128xf32>,
    %c0_52 = arith.constant 0 : index
    %c0_53 = arith.constant 0 : index
    %80 = vector.load %arg15[%c0_52, %c0_53] : memref<64x128xf32, #tpu.memory_space<vmem>>, vector<64x128xf32>
    %c0_54 = arith.constant 0 : index
    %c0_55 = arith.constant 0 : index
    %81 = vector.load %arg13[%c0_54, %c0_55] : memref<64x128xf32, #tpu.memory_space<vmem>>, vector<64x128xf32>
    %cst_56 = arith.constant dense<0.000000e+00> : vector<64x128xf32>
    %82 = tpu.matmul %80, %13, %cst_56 {dimension_numbers = #tpu.dot_dimension_numbers<[1], [0], [0], [1], [0, 0, 1, 1], [], []>} : vector<64x128xf32>, vector<128x128xf32>, vector<64x128xf32> -> vector<64x128xf32>
    %83 = arith.addf %81, %82 : vector<64x128xf32>
    %c0_57 = arith.constant 0 : index
    %c0_58 = arith.constant 0 : index
    %84 = vector.load %arg14[%c0_57, %c0_58] : memref<64x128xf32, #tpu.memory_space<vmem>>, vector<64x128xf32>
    %c0_59 = arith.constant 0 : index
    %c0_60 = arith.constant 0 : index
    %85 = vector.load %arg7[%c0_59, %c0_60] : memref<128x128xf32, #tpu.memory_space<vmem>>, vector<128x128xf32>
    %cst_61 = arith.constant dense<0.000000e+00> : vector<64x128xf32>
    %86 = tpu.matmul %80, %85, %cst_61 {dimension_numbers = #tpu.dot_dimension_numbers<[1], [0], [0], [1], [0, 0, 1, 1], [], []>} : vector<64x128xf32>, vector<128x128xf32>, vector<64x128xf32> -> vector<64x128xf32>
    %87 = arith.addf %84, %86 : vector<64x128xf32>
    %c0_62 = arith.constant 0 : index
    %c0_63 = arith.constant 0 : index
    %88 = vector.load %arg8[%c0_62, %c0_63] : memref<128x128xf32, #tpu.memory_space<vmem>>, vector<128x128xf32>
    %cst_64 = arith.constant dense<0.000000e+00> : vector<64x128xf32>
    %89 = tpu.matmul %83, %88, %cst_64 {dimension_numbers = #tpu.dot_dimension_numbers<[1], [0], [0], [1], [0, 0, 1, 1], [], []>} : vector<64x128xf32>, vector<128x128xf32>, vector<64x128xf32> -> vector<64x128xf32>
    %c0_65 = arith.constant 0 : index
    %c0_66 = arith.constant 0 : index
    %90 = vector.load %arg9[%c0_65, %c0_66] : memref<128x128xf32, #tpu.memory_space<vmem>>, vector<128x128xf32>
    %cst_67 = arith.constant dense<0.000000e+00> : vector<64x128xf32>
    %91 = tpu.matmul %87, %90, %cst_67 {dimension_numbers = #tpu.dot_dimension_numbers<[1], [0], [0], [1], [0, 0, 1, 1], [], []>} : vector<64x128xf32>, vector<128x128xf32>, vector<64x128xf32> -> vector<64x128xf32>
    %92 = arith.addf %89, %91 : vector<64x128xf32>
    %c0_68 = arith.constant 0 : index
    %c0_69 = arith.constant 0 : index
    %93 = vector.load %arg10[%c0_68, %c0_69] : memref<1x128xf32, #tpu.memory_space<vmem>>, vector<1x128xf32>
    %94 = vector.broadcast %93 : vector<1x128xf32> to vector<64x128xf32>
    %95 = arith.addf %92, %94 : vector<64x128xf32>
    %cst_70 = arith.constant dense<0xFF800000> : vector<64xf32>
    %96 = vector.multi_reduction <maximumf>, %95, %cst_70 [1] : vector<64x128xf32> to vector<64xf32>
    %97 = vector.shape_cast %96 : vector<64xf32> to vector<64x1xf32>
    %98 = vector.broadcast %97 : vector<64x1xf32> to vector<64x128xf32>
    %99 = arith.subf %95, %98 : vector<64x128xf32>
    %100 = math.exp %99 : vector<64x128xf32>
    %cst_71 = arith.constant dense<0.000000e+00> : vector<64xf32>
    %101 = vector.multi_reduction <add>, %100, %cst_71 [1] : vector<64x128xf32> to vector<64xf32>
    %102 = vector.shape_cast %101 : vector<64xf32> to vector<64x1xf32>
    %103 = math.log %102 : vector<64x1xf32>
    %104 = vector.broadcast %103 : vector<64x1xf32> to vector<64x128xf32>
    %105 = arith.subf %99, %104 : vector<64x128xf32>
    %c0_72 = arith.constant 0 : index
    %c0_73 = arith.constant 0 : index
    %106 = vector.load %arg11[%c0_72, %c0_73] : memref<64x128xf32, #tpu.memory_space<vmem>>, vector<64x128xf32>
    tpu.vector_store %arg11[%c0_72, %c0_73], %105 {strides = array<i32>} : memref<64x128xf32, #tpu.memory_space<vmem>>, vector<64x128xf32>,
    return
  }
}

</mosaic_0001>

<llo_original>
// kernel: tpu_custom_call.1
$region0: #{tpu_custom_call.1}
  #allocation0 [shape = 'u32[]', space=smem, size = 0x4, offset = 0x4, fixed_abs, tag = 'smem constant byte address 0x4 - core index']
  #allocation1 [shape = 'u32[72,128]{1,0:T(1,128)}', space=vmem, size = 0x9000, scoped, tag = 'internal scratch']
  #allocation2 [shape = 'f32[64,128]{1,0:T(8,128)}', space=vmem, size = 0x8000, scoped, tag = 'scratch operand']
  #allocation3 [shape = 'f32[64,128]{1,0:T(8,128)}', space=vmem, size = 0x8000, scoped, tag = 'scratch operand']
  #allocation4 [shape = 'f32[64,128]{1,0:T(8,128)}', space=vmem, size = 0x8000, scoped, tag = 'scratch operand']
  %s0 = inlined_call_operand.vmem [shape: f32[64,12], index: 0, kind: input, shape index: {}]
  %s1 = inlined_call_operand.hbm [shape: f32[8,128], index: 1, kind: input, shape index: {}, may-alias: {1,12}]
  %s2 = inlined_call_operand.vmem [shape: f32[12,128], index: 2, kind: input, shape index: {}]
  %s3 = inlined_call_operand.vmem [shape: f32[12,128], index: 3, kind: input, shape index: {}]
  %s4 = inlined_call_operand.vmem [shape: f32[1,128], index: 4, kind: input, shape index: {}]
  %s5 = inlined_call_operand.vmem [shape: f32[1,128], index: 5, kind: input, shape index: {}]
  %s6 = inlined_call_operand.hbm [shape: f32[128,128], index: 6, kind: input, shape index: {}]
  %s7 = inlined_call_operand.hbm [shape: f32[128,128], index: 7, kind: input, shape index: {}]
  %s8 = inlined_call_operand.hbm [shape: f32[128,128], index: 8, kind: input, shape index: {}]
  %s9 = inlined_call_operand.hbm [shape: f32[128,128], index: 9, kind: input, shape index: {}]
  %s10 = inlined_call_operand.vmem [shape: f32[1,128], index: 10, kind: input, shape index: {}]
  %s11 = inlined_call_operand.hbm [shape: f32[64,128], index: 11, kind: output, shape index: {0}]
  %s12 = inlined_call_operand.hbm [shape: f32[8,128], index: 12, kind: output, shape index: {1}, may-alias: {1,12}]
  %13 = xla_tuple %s11, %s12
  %s14 = sld [smem:[#allocation0]]
  $region82: #{tpu_custom_call.1} parent=0
    _
  %s16 = ssub.s32 1, %s14
  %s17 = scalar_select 0, %s16, %s14
  $region1: #{tpu_custom_call.1} parent=0
    #allocation5 [shape = 'u8[4096]{0}', space=vmem, size = 0x1000, scoped, tag = 'input window, operand 1, single buffered']
    #allocation6 [shape = 's32[1]{0}', space=sflag, size = 0x4, scoped, tag = 'scoped memory for tpu_custom_call.1']
    #allocation7 [shape = 's32[1]{0}', space=sflag, size = 0x4, scoped, tag = 'scoped memory for tpu_custom_call.1']
    #allocation8 [shape = 'u8[65536]{0}', space=vmem, size = 0x10000, scoped, tag = 'input window, operand 6, single buffered']
    #allocation9 [shape = 's32[1]{0}', space=sflag, size = 0x4, scoped, tag = 'scoped memory for tpu_custom_call.1']
    #allocation10 [shape = 'u8[65536]{0}', space=vmem, size = 0x10000, scoped, tag = 'input window, operand 7, single buffered']
    #allocation11 [shape = 'u8[65536]{0}', space=vmem, size = 0x10000, scoped, tag = 'input window, operand 8, single buffered']
    #allocation12 [shape = 's32[1]{0}', space=sflag, size = 0x4, scoped, tag = 'scoped memory for tpu_custom_call.1']
    #allocation13 [shape = 'u8[65536]{0}', space=vmem, size = 0x10000, scoped, tag = 'input window, operand 9, single buffered']
    #allocation14 [shape = 'u8[32768]{0}', space=vmem, size = 0x8000, scoped, tag = 'output window, operand 0, single buffered']
    #allocation15 [shape = 'u8[4096]{0}', space=vmem, size = 0x1000, scoped, tag = 'output window, operand 1, single buffered']
    #allocation16 [shape = 's32[1]{0}', space=sflag, size = 0x4, scoped, tag = 'scoped memory for tpu_custom_call.1']
    %18 = vsyncpa [#allocation6], 0
    %19 = vsyncpa [#allocation9], 0
    %20 = vsyncpa [#allocation12], 0
    %21 = vsyncpa [#allocation7], 0
    %22 = vsyncpa [#allocation16], 0
    // Predicated region
    $region2: #{tpu_custom_call.1} parent=1 // pred_check
      _
    $region3: #{tpu_custom_call.1} parent=1 // pred_check_branch
      %24 = sbr.rel (0) target = $region5
    $region4: #{tpu_custom_call.1} parent=1 // pred_region
      _
    $region5: #{tpu_custom_call.1} parent=1 // pred_fallthru
      _
    // Predicated region
    $region6: #{tpu_custom_call.1} parent=1 // pred_check
      _
    $region7: #{tpu_custom_call.1} parent=1 // pred_check_branch
      %26 = sbr.rel (0) target = $region9
    $region8: #{tpu_custom_call.1} parent=1 // pred_region
      %28 = vsyncadd [#allocation6], 0
      %s30 = sshll.u32 %s1, 4
      %s31 = int_to_ptr.hbm [resolvable:$true] %s30
      %s32 = sshll.u32 [#allocation5], 4
      %s33 = int_to_ptr.vmem [resolvable:$true] %s32
      %35 = dma.hbm_to_vmem [thread:$0]  %s31, 128, %s33, [#allocation6]
    $region9: #{tpu_custom_call.1} parent=1 // pred_fallthru
      _
    // Predicated region
    $region10: #{tpu_custom_call.1} parent=1 // pred_check
      _
    $region11: #{tpu_custom_call.1} parent=1 // pred_check_branch
      %37 = sbr.rel (0) target = $region13
    $region12: #{tpu_custom_call.1} parent=1 // pred_region
      _
    $region13: #{tpu_custom_call.1} parent=1 // pred_fallthru
      _
    // Predicated region
    $region14: #{tpu_custom_call.1} parent=1 // pred_check
      _
    $region15: #{tpu_custom_call.1} parent=1 // pred_check_branch
      %39 = sbr.rel (0) target = $region17
    $region16: #{tpu_custom_call.1} parent=1 // pred_region
      _
    $region17: #{tpu_custom_call.1} parent=1 // pred_fallthru
      _
    // Predicated region
    $region18: #{tpu_custom_call.1} parent=1 // pred_check
      _
    $region19: #{tpu_custom_call.1} parent=1 // pred_check_branch
      %41 = sbr.rel (0) target = $region21
    $region20: #{tpu_custom_call.1} parent=1 // pred_region
      _
    $region21: #{tpu_custom_call.1} parent=1 // pred_fallthru
      _
    // Predicated region
    $region22: #{tpu_custom_call.1} parent=1 // pred_check
      _
    $region23: #{tpu_custom_call.1} parent=1 // pred_check_branch
      %43 = sbr.rel (0) target = $region25
    $region24: #{tpu_custom_call.1} parent=1 // pred_region
      _
    $region25: #{tpu_custom_call.1} parent=1 // pred_fallthru
      _
    // Predicated region
    $region26: #{tpu_custom_call.1} parent=1 // pred_check
      _
    $region27: #{tpu_custom_call.1} parent=1 // pred_check_branch
      %45 = sbr.rel (0) target = $region29
    $region28: #{tpu_custom_call.1} parent=1 // pred_region
      %47 = vsyncadd [#allocation9], 0
      %s48 = sshll.u32 %s6, 4
      %s49 = int_to_ptr.hbm [resolvable:$true] %s48
      %s50 = sshll.u32 [#allocation8], 4
      %s51 = int_to_ptr.vmem [resolvable:$true] %s50
      %56 = dma.hbm_to_vmem [thread:$0]  %s49, 2048, %s51, [#allocation9], 128, 128, 8
    $region29: #{tpu_custom_call.1} parent=1 // pred_fallthru
      _
    // Predicated region
    $region30: #{tpu_custom_call.1} parent=1 // pred_check
      _
    $region31: #{tpu_custom_call.1} parent=1 // pred_check_branch
      %58 = sbr.rel (0) target = $region33
    $region32: #{tpu_custom_call.1} parent=1 // pred_region
      %60 = vsyncadd [#allocation9], 0
      %s61 = sshll.u32 %s7, 4
      %s62 = int_to_ptr.hbm [resolvable:$true] %s61
      %s63 = sshll.u32 [#allocation10], 4
      %s64 = int_to_ptr.vmem [resolvable:$true] %s63
      %69 = dma.hbm_to_vmem [thread:$0]  %s62, 2048, %s64, [#allocation9], 128, 128, 8
    $region33: #{tpu_custom_call.1} parent=1 // pred_fallthru
      _
    // Predicated region
    $region34: #{tpu_custom_call.1} parent=1 // pred_check
      _
    $region35: #{tpu_custom_call.1} parent=1 // pred_check_branch
      %71 = sbr.rel (0) target = $region37
    $region36: #{tpu_custom_call.1} parent=1 // pred_region
      %73 = vsyncadd [#allocation12], 0
      %s74 = sshll.u32 %s8, 4
      %s75 = int_to_ptr.hbm [resolvable:$true] %s74
      %s76 = sshll.u32 [#allocation11], 4
      %s77 = int_to_ptr.vmem [resolvable:$true] %s76
      %82 = dma.hbm_to_vmem [thread:$0]  %s75, 2048, %s77, [#allocation12], 128, 128, 8
    $region37: #{tpu_custom_call.1} parent=1 // pred_fallthru
      _
    // Predicated region
    $region38: #{tpu_custom_call.1} parent=1 // pred_check
      _
    $region39: #{tpu_custom_call.1} parent=1 // pred_check_branch
      %84 = sbr.rel (0) target = $region41
    $region40: #{tpu_custom_call.1} parent=1 // pred_region
      %86 = vsyncadd [#allocation12], 0
      %s87 = sshll.u32 %s9, 4
      %s88 = int_to_ptr.hbm [resolvable:$true] %s87
      %s89 = sshll.u32 [#allocation13], 4
      %s90 = int_to_ptr.vmem [resolvable:$true] %s89
      %95 = dma.hbm_to_vmem [thread:$0]  %s88, 2048, %s90, [#allocation12], 128, 128, 8
    $region41: #{tpu_custom_call.1} parent=1 // pred_fallthru
      _
    // Predicated region
    $region42: #{tpu_custom_call.1} parent=1 // pred_check
      _
    $region43: #{tpu_custom_call.1} parent=1 // pred_check_branch
      %97 = sbr.rel (0) target = $region45
    $region44: #{tpu_custom_call.1} parent=1 // pred_region
      _
    $region45: #{tpu_custom_call.1} parent=1 // pred_fallthru
      _
    // Predicated region
    $region46: #{tpu_custom_call.1} parent=1 // pred_check
      _
    $region47: #{tpu_custom_call.1} parent=1 // pred_check_branch
      %99 = sbr.rel (0) target = $region49
    $region48: #{tpu_custom_call.1} parent=1 // pred_region
      %101 = dma.done [#allocation6], 128
    $region49: #{tpu_custom_call.1} parent=1 // pred_fallthru
      _
    // Predicated region
    $region50: #{tpu_custom_call.1} parent=1 // pred_check
      _
    $region51: #{tpu_custom_call.1} parent=1 // pred_check_branch
      %103 = sbr.rel (0) target = $region53
    $region52: #{tpu_custom_call.1} parent=1 // pred_region
      %105 = dma.done [#allocation9], 2048
    $region53: #{tpu_custom_call.1} parent=1 // pred_fallthru
      _
    // Predicated region
    $region54: #{tpu_custom_call.1} parent=1 // pred_check
      _
    $region55: #{tpu_custom_call.1} parent=1 // pred_check_branch
      %107 = sbr.rel (0) target = $region57
    $region56: #{tpu_custom_call.1} parent=1 // pred_region
      %109 = dma.done [#allocation9], 2048
    $region57: #{tpu_custom_call.1} parent=1 // pred_fallthru
      _
    // Predicated region
    $region58: #{tpu_custom_call.1} parent=1 // pred_check
      _
    $region59: #{tpu_custom_call.1} parent=1 // pred_check_branch
      %111 = sbr.rel (0) target = $region61
    $region60: #{tpu_custom_call.1} parent=1 // pred_region
      %113 = dma.done [#allocation12], 2048
    $region61: #{tpu_custom_call.1} parent=1 // pred_fallthru
      _
    // Predicated region
    $region62: #{tpu_custom_call.1} parent=1 // pred_check
      _
    $region63: #{tpu_custom_call.1} parent=1 // pred_check_branch
      %115 = sbr.rel (0) target = $region65
    $region64: #{tpu_custom_call.1} parent=1 // pred_region
      %117 = dma.done [#allocation12], 2048
    $region65: #{tpu_custom_call.1} parent=1 // pred_fallthru
      _
    %v118 = vld [vmem:[%s0] sm:$0xff]
    %v119 = vld [vmem:[%s0 + $0x8] sm:$0xff]
    %v120 = vld [vmem:[%s0 + $0x10] sm:$0xff]
    %v121 = vld [vmem:[%s0 + $0x18] sm:$0xff]
    %v122 = vld [vmem:[%s0 + $0x20] sm:$0xff]
    %v123 = vld [vmem:[%s0 + $0x28] sm:$0xff]
    %v124 = vld [vmem:[%s0 + $0x30] sm:$0xff]
    %v125 = vld [vmem:[%s0 + $0x38] sm:$0xff]
    %v126 = vld [vmem:[%s2] sm:$0xff]
    %v127 = vld [vmem:[%s2 + $0x8] sm:$0xf]
    %v128 = vld [vmem:[%s4] sm:$0x1]
    %v130 = vperm.slane %v128, 0
    %vm132 = vcmask 97280
    %v134 = vsel %vm132, %v118, 0
    %v137 = vsel %vm132, %v119, 0
    %v140 = vsel %vm132, %v120, 0
    %v143 = vsel %vm132, %v121, 0
    %v146 = vsel %vm132, %v122, 0
    %v149 = vsel %vm132, %v123, 0
    %v152 = vsel %vm132, %v124, 0
    %v155 = vsel %vm132, %v125, 0
    %vm157 = vcmask 1043456
    %v159 = vsel %vm157, %v127, 0
    %161 = vmatpush.msra.mxu0 0.0
    %162 = vmatpush.msra.mxu0 0.0
    %163 = vmatpush.msra.mxu0 0.0
    %164 = vmatpush.msra.mxu0 0.0
    %165 = vmatpush.msra.mxu0 0.0
    %166 = vmatpush.msra.mxu0 0.0
    %167 = vmatpush.msra.mxu0 0.0
    %168 = vmatpush.msra.mxu0 0.0
    %169 = vmatpush.msra.mxu0 0.0
    %170 = vmatpush.msra.mxu0 0.0
    %171 = vmatpush.msra.mxu0 0.0
    %172 = vmatpush.msra.mxu0 0.0
    %173 = vmatpush.msra.mxu0 0.0
    %174 = vmatpush.msra.mxu0 0.0
    %175 = vmatpush.msra.mxu0 %v159
    %176 = vmatpush.msra.mxu0 %v126
    %177 = vmatmul.f32.gmra.mxu0 %v134
    %v178 = vpop.f32.mrf.mxu0
    %v179 = vadd.f32 %v130, %v178
    %180 = vmatmul.f32.gmra.mxu0 %v137
    %v181 = vpop.f32.mrf.mxu0
    %v182 = vadd.f32 %v130, %v181
    %183 = vmatmul.f32.gmra.mxu0 %v140
    %v184 = vpop.f32.mrf.mxu0
    %v185 = vadd.f32 %v130, %v184
    %186 = vmatmul.f32.gmra.mxu0 %v143
    %v187 = vpop.f32.mrf.mxu0
    %v188 = vadd.f32 %v130, %v187
    %189 = vmatmul.f32.gmra.mxu0 %v146
    %v190 = vpop.f32.mrf.mxu0
    %v191 = vadd.f32 %v130, %v190
    %192 = vmatmul.f32.gmra.mxu0 %v149
    %v193 = vpop.f32.mrf.mxu0
    %v194 = vadd.f32 %v130, %v193
    %195 = vmatmul.f32.gmra.mxu0 %v152
    %v196 = vpop.f32.mrf.mxu0
    %v197 = vadd.f32 %v130, %v196
    %198 = vmatmul.f32.gmra.mxu0 %v155
    %v199 = vpop.f32.mrf.mxu0
    %v200 = vadd.f32 %v130, %v199
    %201 = vdwg.mxu0
    %202 = vst [vmem:[#allocation2] sm:$0xff] %v179
    %203 = vst [vmem:[#allocation2 + $0x8] sm:$0xff] %v182
    %204 = vst [vmem:[#allocation2 + $0x10] sm:$0xff] %v185
    %205 = vst [vmem:[#allocation2 + $0x18] sm:$0xff] %v188
    %206 = vst [vmem:[#allocation2 + $0x20] sm:$0xff] %v191
    %207 = vst [vmem:[#allocation2 + $0x28] sm:$0xff] %v194
    %208 = vst [vmem:[#allocation2 + $0x30] sm:$0xff] %v197
    %209 = vst [vmem:[#allocation2 + $0x38] sm:$0xff] %v200
    %v210 = vld [vmem:[%s3] sm:$0xff]
    %v211 = vld [vmem:[%s3 + $0x8] sm:$0xf]
    %v212 = vld [vmem:[%s5] sm:$0x1]
    %v214 = vperm.slane %v212, 0
    %v217 = vsel %vm157, %v211, 0
    %219 = vmatpush.msra.mxu0 0.0
    %220 = vmatpush.msra.mxu0 0.0
    %221 = vmatpush.msra.mxu0 0.0
    %222 = vmatpush.msra.mxu0 0.0
    %223 = vmatpush.msra.mxu0 0.0
    %224 = vmatpush.msra.mxu0 0.0
    %225 = vmatpush.msra.mxu0 0.0
    %226 = vmatpush.msra.mxu0 0.0
    %227 = vmatpush.msra.mxu0 0.0
    %228 = vmatpush.msra.mxu0 0.0
    %229 = vmatpush.msra.mxu0 0.0
    %230 = vmatpush.msra.mxu0 0.0
    %231 = vmatpush.msra.mxu0 0.0
    %232 = vmatpush.msra.mxu0 0.0
    %233 = vmatpush.msra.mxu0 %v217
    %234 = vmatpush.msra.mxu0 %v210
    %235 = vmatmul.f32.gmra.mxu0 %v134
    %v236 = vpop.f32.mrf.mxu0
    %v237 = vadd.f32 %v214, %v236
    %238 = vmatmul.f32.gmra.mxu0 %v137
    %v239 = vpop.f32.mrf.mxu0
    %v240 = vadd.f32 %v214, %v239
    %241 = vmatmul.f32.gmra.mxu0 %v140
    %v242 = vpop.f32.mrf.mxu0
    %v243 = vadd.f32 %v214, %v242
    %244 = vmatmul.f32.gmra.mxu0 %v143
    %v245 = vpop.f32.mrf.mxu0
    %v246 = vadd.f32 %v214, %v245
    %247 = vmatmul.f32.gmra.mxu0 %v146
    %v248 = vpop.f32.mrf.mxu0
    %v249 = vadd.f32 %v214, %v248
    %250 = vmatmul.f32.gmra.mxu0 %v149
    %v251 = vpop.f32.mrf.mxu0
    %v252 = vadd.f32 %v214, %v251
    %253 = vmatmul.f32.gmra.mxu0 %v152
    %v254 = vpop.f32.mrf.mxu0
    %v255 = vadd.f32 %v214, %v254
    %256 = vmatmul.f32.gmra.mxu0 %v155
    %v257 = vpop.f32.mrf.mxu0
    %v258 = vadd.f32 %v214, %v257
    %259 = vdwg.mxu0
    %260 = vst [vmem:[#allocation3] sm:$0xff] %v237
    %261 = vst [vmem:[#allocation3 + $0x8] sm:$0xff] %v240
    %262 = vst [vmem:[#allocation3 + $0x10] sm:$0xff] %v243
    %263 = vst [vmem:[#allocation3 + $0x18] sm:$0xff] %v246
    %264 = vst [vmem:[#allocation3 + $0x20] sm:$0xff] %v249
    %265 = vst [vmem:[#allocation3 + $0x28] sm:$0xff] %v252
    %266 = vst [vmem:[#allocation3 + $0x30] sm:$0xff] %v255
    %267 = vst [vmem:[#allocation3 + $0x38] sm:$0xff] %v258
    %v268 = vld [vmem:[#allocation8] sm:$0xff]
    %v269 = vld [vmem:[#allocation8 + $0x8] sm:$0xff]
    %v270 = vld [vmem:[#allocation8 + $0x10] sm:$0xff]
    %v271 = vld [vmem:[#allocation8 + $0x18] sm:$0xff]
    %v272 = vld [vmem:[#allocation8 + $0x20] sm:$0xff]
    %v273 = vld [vmem:[#allocation8 + $0x28] sm:$0xff]
    %v274 = vld [vmem:[#allocation8 + $0x30] sm:$0xff]
    %v275 = vld [vmem:[#allocation8 + $0x38] sm:$0xff]
    %v276 = vld [vmem:[#allocation8 + $0x40] sm:$0xff]
    %v277 = vld [vmem:[#allocation8 + $0x48] sm:$0xff]
    %v278 = vld [vmem:[#allocation8 + $0x50] sm:$0xff]
    %v279 = vld [vmem:[#allocation8 + $0x58] sm:$0xff]
    %v280 = vld [vmem:[#allocation8 + $0x60] sm:$0xff]
    %v281 = vld [vmem:[#allocation8 + $0x68] sm:$0xff]
    %v282 = vld [vmem:[#allocation8 + $0x70] sm:$0xff]
    %v283 = vld [vmem:[#allocation8 + $0x78] sm:$0xff]
    %v284 = vld [vmem:[#allocation5] sm:$0xff]
    %285 = vst [vmem:[#allocation4] sm:$0xff] %v284
    %v286 = vld [vmem:[#allocation2] sm:$0xff]
    %287 = vmatpush.msra.mxu0 %v283
    %288 = vmatpush.msra.mxu0 %v282
    %289 = vmatpush.msra.mxu0 %v281
    %290 = vmatpush.msra.mxu0 %v280
    %291 = vmatpush.msra.mxu0 %v279
    %292 = vmatpush.msra.mxu0 %v278
    %293 = vmatpush.msra.mxu0 %v277
    %294 = vmatpush.msra.mxu0 %v276
    %295 = vmatpush.msra.mxu0 %v275
    %296 = vmatpush.msra.mxu0 %v274
    %297 = vmatpush.msra.mxu0 %v273
    %298 = vmatpush.msra.mxu0 %v272
    %299 = vmatpush.msra.mxu0 %v271
    %300 = vmatpush.msra.mxu0 %v270
    %301 = vmatpush.msra.mxu0 %v269
    %302 = vmatpush.msra.mxu0 %v268
    %303 = vmatmul.f32.gmra.mxu0 %v284
    %v304 = vpop.f32.mrf.mxu0
    %v305 = vadd.f32 0.0, %v304
    %306 = vdwg.mxu0
    %v307 = vadd.f32 %v286, %v305
    %s308 = scalar_lea.vmem [#allocation4], 8
    %309 = vst [vmem:[%s308] sm:$0xff] %v307
    %s310 = scalar_lea.vmem [#allocation2], 8
    %v311 = vld [vmem:[%s310] sm:$0xff]
    %312 = vmatpush.msra.mxu0 %v283
    %313 = vmatpush.msra.mxu0 %v282
    %314 = vmatpush.msra.mxu0 %v281
    %315 = vmatpush.msra.mxu0 %v280
    %316 = vmatpush.msra.mxu0 %v279
    %317 = vmatpush.msra.mxu0 %v278
    %318 = vmatpush.msra.mxu0 %v277
    %319 = vmatpush.msra.mxu0 %v276
    %320 = vmatpush.msra.mxu0 %v275
    %321 = vmatpush.msra.mxu0 %v274
    %322 = vmatpush.msra.mxu0 %v273
    %323 = vmatpush.msra.mxu0 %v272
    %324 = vmatpush.msra.mxu0 %v271
    %325 = vmatpush.msra.mxu0 %v270
    %326 = vmatpush.msra.mxu0 %v269
    %327 = vmatpush.msra.mxu0 %v268
    %328 = vmatmul.f32.gmra.mxu0 %v307
    %v329 = vpop.f32.mrf.mxu0
    %v330 = vadd.f32 0.0, %v329
    %331 = vdwg.mxu0
    %v332 = vadd.f32 %v311, %v330
    %s333 = scalar_lea.vmem [#allocation4], 16
    %334 = vst [vmem:[%s333] sm:$0xff] %v332
    %s335 = scalar_lea.vmem [#allocation2], 16
    %v336 = vld [vmem:[%s335] sm:$0xff]
    %337 = vmatpush.msra.mxu0 %v283
    %338 = vmatpush.msra.mxu0 %v282
    %339 = vmatpush.msra.mxu0 %v281
    %340 = vmatpush.msra.mxu0 %v280
    %341 = vmatpush.msra.mxu0 %v279
    %342 = vmatpush.msra.mxu0 %v278
    %343 = vmatpush.msra.mxu0 %v277
    %344 = vmatpush.msra.mxu0 %v276
    %345 = vmatpush.msra.mxu0 %v275
    %346 = vmatpush.msra.mxu0 %v274
    %347 = vmatpush.msra.mxu0 %v273
    %348 = vmatpush.msra.mxu0 %v272
    %349 = vmatpush.msra.mxu0 %v271
    %350 = vmatpush.msra.mxu0 %v270
    %351 = vmatpush.msra.mxu0 %v269
    %352 = vmatpush.msra.mxu0 %v268
    %353 = vmatmul.f32.gmra.mxu0 %v332
    %v354 = vpop.f32.mrf.mxu0
    %v355 = vadd.f32 0.0, %v354
    %356 = vdwg.mxu0
    %v357 = vadd.f32 %v336, %v355
    %s358 = scalar_lea.vmem [#allocation4], 24
    %359 = vst [vmem:[%s358] sm:$0xff] %v357
    %s360 = scalar_lea.vmem [#allocation2], 24
    %v361 = vld [vmem:[%s360] sm:$0xff]
    %362 = vmatpush.msra.mxu0 %v283
    %363 = vmatpush.msra.mxu0 %v282
    %364 = vmatpush.msra.mxu0 %v281
    %365 = vmatpush.msra.mxu0 %v280
    %366 = vmatpush.msra.mxu0 %v279
    %367 = vmatpush.msra.mxu0 %v278
    %368 = vmatpush.msra.mxu0 %v277
    %369 = vmatpush.msra.mxu0 %v276
    %370 = vmatpush.msra.mxu0 %v275
    %371 = vmatpush.msra.mxu0 %v274
    %372 = vmatpush.msra.mxu0 %v273
    %373 = vmatpush.msra.mxu0 %v272
    %374 = vmatpush.msra.mxu0 %v271
    %375 = vmatpush.msra.mxu0 %v270
    %376 = vmatpush.msra.mxu0 %v269
    %377 = vmatpush.msra.mxu0 %v268
    %378 = vmatmul.f32.gmra.mxu0 %v357
    %v379 = vpop.f32.mrf.mxu0
    %v380 = vadd.f32 0.0, %v379
    %381 = vdwg.mxu0
    %v382 = vadd.f32 %v361, %v380
    %s383 = scalar_lea.vmem [#allocation4], 32
    %384 = vst [vmem:[%s383] sm:$0xff] %v382
    %s385 = scalar_lea.vmem [#allocation2], 32
    %v386 = vld [vmem:[%s385] sm:$0xff]
    %387 = vmatpush.msra.mxu0 %v283
    %388 = vmatpush.msra.mxu0 %v282
    %389 = vmatpush.msra.mxu0 %v281
    %390 = vmatpush.msra.mxu0 %v280
    %391 = vmatpush.msra.mxu0 %v279
    %392 = vmatpush.msra.mxu0 %v278
    %393 = vmatpush.msra.mxu0 %v277
    %394 = vmatpush.msra.mxu0 %v276
    %395 = vmatpush.msra.mxu0 %v275
    %396 = vmatpush.msra.mxu0 %v274
    %397 = vmatpush.msra.mxu0 %v273
    %398 = vmatpush.msra.mxu0 %v272
    %399 = vmatpush.msra.mxu0 %v271
    %400 = vmatpush.msra.mxu0 %v270
    %401 = vmatpush.msra.mxu0 %v269
    %402 = vmatpush.msra.mxu0 %v268
    %403 = vmatmul.f32.gmra.mxu0 %v382
    %v404 = vpop.f32.mrf.mxu0
    %v405 = vadd.f32 0.0, %v404
    %406 = vdwg.mxu0
    %v407 = vadd.f32 %v386, %v405
    %s408 = scalar_lea.vmem [#allocation4], 40
    %409 = vst [vmem:[%s408] sm:$0xff] %v407
    %s410 = scalar_lea.vmem [#allocation2], 40
    %v411 = vld [vmem:[%s410] sm:$0xff]
    %412 = vmatpush.msra.mxu0 %v283
    %413 = vmatpush.msra.mxu0 %v282
    %414 = vmatpush.msra.mxu0 %v281
    %415 = vmatpush.msra.mxu0 %v280
    %416 = vmatpush.msra.mxu0 %v279
    %417 = vmatpush.msra.mxu0 %v278
    %418 = vmatpush.msra.mxu0 %v277
    %419 = vmatpush.msra.mxu0 %v276
    %420 = vmatpush.msra.mxu0 %v275
    %421 = vmatpush.msra.mxu0 %v274
    %422 = vmatpush.msra.mxu0 %v273
    %423 = vmatpush.msra.mxu0 %v272
    %424 = vmatpush.msra.mxu0 %v271
    %425 = vmatpush.msra.mxu0 %v270
    %426 = vmatpush.msra.mxu0 %v269
    %427 = vmatpush.msra.mxu0 %v268
    %428 = vmatmul.f32.gmra.mxu0 %v407
    %v429 = vpop.f32.mrf.mxu0
    %v430 = vadd.f32 0.0, %v429
    %431 = vdwg.mxu0
    %v432 = vadd.f32 %v411, %v430
    %s433 = scalar_lea.vmem [#allocation4], 48
    %434 = vst [vmem:[%s433] sm:$0xff] %v432
    %s435 = scalar_lea.vmem [#allocation2], 48
    %v436 = vld [vmem:[%s435] sm:$0xff]
    %437 = vmatpush.msra.mxu0 %v283
    %438 = vmatpush.msra.mxu0 %v282
    %439 = vmatpush.msra.mxu0 %v281
    %440 = vmatpush.msra.mxu0 %v280
    %441 = vmatpush.msra.mxu0 %v279
    %442 = vmatpush.msra.mxu0 %v278
    %443 = vmatpush.msra.mxu0 %v277
    %444 = vmatpush.msra.mxu0 %v276
    %445 = vmatpush.msra.mxu0 %v275
    %446 = vmatpush.msra.mxu0 %v274
    %447 = vmatpush.msra.mxu0 %v273
    %448 = vmatpush.msra.mxu0 %v272
    %449 = vmatpush.msra.mxu0 %v271
    %450 = vmatpush.msra.mxu0 %v270
    %451 = vmatpush.msra.mxu0 %v269
    %452 = vmatpush.msra.mxu0 %v268
    %453 = vmatmul.f32.gmra.mxu0 %v432
    %v454 = vpop.f32.mrf.mxu0
    %v455 = vadd.f32 0.0, %v454
    %456 = vdwg.mxu0
    %v457 = vadd.f32 %v436, %v455
    %s458 = scalar_lea.vmem [#allocation4], 56
    %459 = vst [vmem:[%s458] sm:$0xff] %v457
    %s460 = scalar_lea.vmem [#allocation2], 56
    %v461 = vld [vmem:[%s460] sm:$0xff]
    %462 = vmatpush.msra.mxu0 %v283
    %463 = vmatpush.msra.mxu0 %v282
    %464 = vmatpush.msra.mxu0 %v281
    %465 = vmatpush.msra.mxu0 %v280
    %466 = vmatpush.msra.mxu0 %v279
    %467 = vmatpush.msra.mxu0 %v278
    %468 = vmatpush.msra.mxu0 %v277
    %469 = vmatpush.msra.mxu0 %v276
    %470 = vmatpush.msra.mxu0 %v275
    %471 = vmatpush.msra.mxu0 %v274
    %472 = vmatpush.msra.mxu0 %v273
    %473 = vmatpush.msra.mxu0 %v272
    %474 = vmatpush.msra.mxu0 %v271
    %475 = vmatpush.msra.mxu0 %v270
    %476 = vmatpush.msra.mxu0 %v269
    %477 = vmatpush.msra.mxu0 %v268
    %478 = vmatmul.f32.gmra.mxu0 %v457
    %v479 = vpop.f32.mrf.mxu0
    %v480 = vadd.f32 0.0, %v479
    %481 = vdwg.mxu0
    %v482 = vadd.f32 %v461, %v480
    %483 = vst [vmem:[#allocation15] sm:$0xff] %v482
    %v484 = vld [vmem:[#allocation4] sm:$0xff]
    %v485 = vld [vmem:[#allocation4 + $0x8] sm:$0xff]
    %v486 = vld [vmem:[#allocation4 + $0x10] sm:$0xff]
    %v487 = vld [vmem:[#allocation4 + $0x18] sm:$0xff]
    %v488 = vld [vmem:[#allocation4 + $0x20] sm:$0xff]
    %v489 = vld [vmem:[#allocation4 + $0x28] sm:$0xff]
    %v490 = vld [vmem:[#allocation4 + $0x30] sm:$0xff]
    %v491 = vld [vmem:[#allocation4 + $0x38] sm:$0xff]
    %v492 = vld [vmem:[#allocation2] sm:$0xff]
    %v493 = vld [vmem:[#allocation2 + $0x8] sm:$0xff]
    %v494 = vld [vmem:[#allocation2 + $0x10] sm:$0xff]
    %v495 = vld [vmem:[#allocation2 + $0x18] sm:$0xff]
    %v496 = vld [vmem:[#allocation2 + $0x20] sm:$0xff]
    %v497 = vld [vmem:[#allocation2 + $0x28] sm:$0xff]
    %v498 = vld [vmem:[#allocation2 + $0x30] sm:$0xff]
    %v499 = vld [vmem:[#allocation2 + $0x38] sm:$0xff]
    %500 = vmatpush.msra.mxu0 %v283
    %501 = vmatpush.msra.mxu0 %v282
    %502 = vmatpush.msra.mxu0 %v281
    %503 = vmatpush.msra.mxu0 %v280
    %504 = vmatpush.msra.mxu0 %v279
    %505 = vmatpush.msra.mxu0 %v278
    %506 = vmatpush.msra.mxu0 %v277
    %507 = vmatpush.msra.mxu0 %v276
    %508 = vmatpush.msra.mxu0 %v275
    %509 = vmatpush.msra.mxu0 %v274
    %510 = vmatpush.msra.mxu0 %v273
    %511 = vmatpush.msra.mxu0 %v272
    %512 = vmatpush.msra.mxu0 %v271
    %513 = vmatpush.msra.mxu0 %v270
    %514 = vmatpush.msra.mxu0 %v269
    %515 = vmatpush.msra.mxu0 %v268
    %516 = vmatmul.f32.gmra.mxu0 %v484
    %v517 = vpop.f32.mrf.mxu0
    %v518 = vadd.f32 0.0, %v517
    %519 = vmatmul.f32.gmra.mxu0 %v485
    %v520 = vpop.f32.mrf.mxu0
    %v521 = vadd.f32 0.0, %v520
    %522 = vmatmul.f32.gmra.mxu0 %v486
    %v523 = vpop.f32.mrf.mxu0
    %v524 = vadd.f32 0.0, %v523
    %525 = vmatmul.f32.gmra.mxu0 %v487
    %v526 = vpop.f32.mrf.mxu0
    %v527 = vadd.f32 0.0, %v526
    %528 = vmatmul.f32.gmra.mxu0 %v488
    %v529 = vpop.f32.mrf.mxu0
    %v530 = vadd.f32 0.0, %v529
    %531 = vmatmul.f32.gmra.mxu0 %v489
    %v532 = vpop.f32.mrf.mxu0
    %v533 = vadd.f32 0.0, %v532
    %534 = vmatmul.f32.gmra.mxu0 %v490
    %v535 = vpop.f32.mrf.mxu0
    %v536 = vadd.f32 0.0, %v535
    %537 = vmatmul.f32.gmra.mxu0 %v491
    %v538 = vpop.f32.mrf.mxu0
    %v539 = vadd.f32 0.0, %v538
    %540 = vdwg.mxu0
    %v541 = vadd.f32 %v492, %v518
    %v542 = vadd.f32 %v493, %v521
    %v543 = vadd.f32 %v494, %v524
    %v544 = vadd.f32 %v495, %v527
    %v545 = vadd.f32 %v496, %v530
    %v546 = vadd.f32 %v497, %v533
    %v547 = vadd.f32 %v498, %v536
    %v548 = vadd.f32 %v499, %v539
    %v549 = vld [vmem:[#allocation3] sm:$0xff]
    %v550 = vld [vmem:[#allocation3 + $0x8] sm:$0xff]
    %v551 = vld [vmem:[#allocation3 + $0x10] sm:$0xff]
    %v552 = vld [vmem:[#allocation3 + $0x18] sm:$0xff]
    %v553 = vld [vmem:[#allocation3 + $0x20] sm:$0xff]
    %v554 = vld [vmem:[#allocation3 + $0x28] sm:$0xff]
    %v555 = vld [vmem:[#allocation3 + $0x30] sm:$0xff]
    %v556 = vld [vmem:[#allocation3 + $0x38] sm:$0xff]
    %v557 = vld [vmem:[#allocation10] sm:$0xff]
    %v558 = vld [vmem:[#allocation10 + $0x8] sm:$0xff]
    %v559 = vld [vmem:[#allocation10 + $0x10] sm:$0xff]
    %v560 = vld [vmem:[#allocation10 + $0x18] sm:$0xff]
    %v561 = vld [vmem:[#allocation10 + $0x20] sm:$0xff]
    %v562 = vld [vmem:[#allocation10 + $0x28] sm:$0xff]
    %v563 = vld [vmem:[#allocation10 + $0x30] sm:$0xff]
    %v564 = vld [vmem:[#allocation10 + $0x38] sm:$0xff]
    %v565 = vld [vmem:[#allocation10 + $0x40] sm:$0xff]
    %v566 = vld [vmem:[#allocation10 + $0x48] sm:$0xff]
    %v567 = vld [vmem:[#allocation10 + $0x50] sm:$0xff]
    %v568 = vld [vmem:[#allocation10 + $0x58] sm:$0xff]
    %v569 = vld [vmem:[#allocation10 + $0x60] sm:$0xff]
    %v570 = vld [vmem:[#allocation10 + $0x68] sm:$0xff]
    %v571 = vld [vmem:[#allocation10 + $0x70] sm:$0xff]
    %v572 = vld [vmem:[#allocation10 + $0x78] sm:$0xff]
    %573 = vmatpush.msra.mxu0 %v572
    %574 = vmatpush.msra.mxu0 %v571
    %575 = vmatpush.msra.mxu0 %v570
    %576 = vmatpush.msra.mxu0 %v569
    %577 = vmatpush.msra.mxu0 %v568
    %578 = vmatpush.msra.mxu0 %v567
    %579 = vmatpush.msra.mxu0 %v566
    %580 = vmatpush.msra.mxu0 %v565
    %581 = vmatpush.msra.mxu0 %v564
    %582 = vmatpush.msra.mxu0 %v563
    %583 = vmatpush.msra.mxu0 %v562
    %584 = vmatpush.msra.mxu0 %v561
    %585 = vmatpush.msra.mxu0 %v560
    %586 = vmatpush.msra.mxu0 %v559
    %587 = vmatpush.msra.mxu0 %v558
    %588 = vmatpush.msra.mxu0 %v557
    %589 = vmatmul.f32.gmra.mxu0 %v484
    %v590 = vpop.f32.mrf.mxu0
    %v591 = vadd.f32 0.0, %v590
    %592 = vmatmul.f32.gmra.mxu0 %v485
    %v593 = vpop.f32.mrf.mxu0
    %v594 = vadd.f32 0.0, %v593
    %595 = vmatmul.f32.gmra.mxu0 %v486
    %v596 = vpop.f32.mrf.mxu0
    %v597 = vadd.f32 0.0, %v596
    %598 = vmatmul.f32.gmra.mxu0 %v487
    %v599 = vpop.f32.mrf.mxu0
    %v600 = vadd.f32 0.0, %v599
    %601 = vmatmul.f32.gmra.mxu0 %v488
    %v602 = vpop.f32.mrf.mxu0
    %v603 = vadd.f32 0.0, %v602
    %604 = vmatmul.f32.gmra.mxu0 %v489
    %v605 = vpop.f32.mrf.mxu0
    %v606 = vadd.f32 0.0, %v605
    %607 = vmatmul.f32.gmra.mxu0 %v490
    %v608 = vpop.f32.mrf.mxu0
    %v609 = vadd.f32 0.0, %v608
    %610 = vmatmul.f32.gmra.mxu0 %v491
    %v611 = vpop.f32.mrf.mxu0
    %v612 = vadd.f32 0.0, %v611
    %613 = vdwg.mxu0
    %v614 = vadd.f32 %v549, %v591
    %v615 = vadd.f32 %v550, %v594
    %v616 = vadd.f32 %v551, %v597
    %v617 = vadd.f32 %v552, %v600
    %v618 = vadd.f32 %v553, %v603
    %v619 = vadd.f32 %v554, %v606
    %v620 = vadd.f32 %v555, %v609
    %v621 = vadd.f32 %v556, %v612
    %v622 = vld [vmem:[#allocation11] sm:$0xff]
    %v623 = vld [vmem:[#allocation11 + $0x8] sm:$0xff]
    %v624 = vld [vmem:[#allocation11 + $0x10] sm:$0xff]
    %v625 = vld [vmem:[#allocation11 + $0x18] sm:$0xff]
    %v626 = vld [vmem:[#allocation11 + $0x20] sm:$0xff]
    %v627 = vld [vmem:[#allocation11 + $0x28] sm:$0xff]
    %v628 = vld [vmem:[#allocation11 + $0x30] sm:$0xff]
    %v629 = vld [vmem:[#allocation11 + $0x38] sm:$0xff]
    %v630 = vld [vmem:[#allocation11 + $0x40] sm:$0xff]
    %v631 = vld [vmem:[#allocation11 + $0x48] sm:$0xff]
    %v632 = vld [vmem:[#allocation11 + $0x50] sm:$0xff]
    %v633 = vld [vmem:[#allocation11 + $0x58] sm:$0xff]
    %v634 = vld [vmem:[#allocation11 + $0x60] sm:$0xff]
    %v635 = vld [vmem:[#allocation11 + $0x68] sm:$0xff]
    %v636 = vld [vmem:[#allocation11 + $0x70] sm:$0xff]
    %v637 = vld [vmem:[#allocation11 + $0x78] sm:$0xff]
    %v638 = vld [vmem:[#allocation13] sm:$0xff]
    %v639 = vld [vmem:[#allocation13 + $0x8] sm:$0xff]
    %v640 = vld [vmem:[#allocation13 + $0x10] sm:$0xff]
    %v641 = vld [vmem:[#allocation13 + $0x18] sm:$0xff]
    %v642 = vld [vmem:[#allocation13 + $0x20] sm:$0xff]
    %v643 = vld [vmem:[#allocation13 + $0x28] sm:$0xff]
    %v644 = vld [vmem:[#allocation13 + $0x30] sm:$0xff]
    %v645 = vld [vmem:[#allocation13 + $0x38] sm:$0xff]
    %v646 = vld [vmem:[#allocation13 + $0x40] sm:$0xff]
    %v647 = vld [vmem:[#allocation13 + $0x48] sm:$0xff]
    %v648 = vld [vmem:[#allocation13 + $0x50] sm:$0xff]
    %v649 = vld [vmem:[#allocation13 + $0x58] sm:$0xff]
    %v650 = vld [vmem:[#allocation13 + $0x60] sm:$0xff]
    %v651 = vld [vmem:[#allocation13 + $0x68] sm:$0xff]
    %v652 = vld [vmem:[#allocation13 + $0x70] sm:$0xff]
    %v653 = vld [vmem:[#allocation13 + $0x78] sm:$0xff]
    %654 = vmatpush.msra.mxu0 %v653
    %655 = vmatpush.msra.mxu0 %v652
    %656 = vmatpush.msra.mxu0 %v651
    %657 = vmatpush.msra.mxu0 %v650
    %658 = vmatpush.msra.mxu0 %v649
    %659 = vmatpush.msra.mxu0 %v648
    %660 = vmatpush.msra.mxu0 %v647
    %661 = vmatpush.msra.mxu0 %v646
    %662 = vmatpush.msra.mxu0 %v645
    %663 = vmatpush.msra.mxu0 %v644
    %664 = vmatpush.msra.mxu0 %v643
    %665 = vmatpush.msra.mxu0 %v642
    %666 = vmatpush.msra.mxu0 %v641
    %667 = vmatpush.msra.mxu0 %v640
    %668 = vmatpush.msra.mxu0 %v639
    %669 = vmatpush.msra.mxu0 %v638
    %670 = vmatmul.f32.gmra.mxu0 %v614
    %v671 = vpop.f32.mrf.mxu0
    %v672 = vadd.f32 0.0, %v671
    %673 = vmatmul.f32.gmra.mxu0 %v615
    %v674 = vpop.f32.mrf.mxu0
    %v675 = vadd.f32 0.0, %v674
    %676 = vmatmul.f32.gmra.mxu0 %v616
    %v677 = vpop.f32.mrf.mxu0
    %v678 = vadd.f32 0.0, %v677
    %679 = vmatmul.f32.gmra.mxu0 %v617
    %v680 = vpop.f32.mrf.mxu0
    %v681 = vadd.f32 0.0, %v680
    %682 = vmatmul.f32.gmra.mxu0 %v618
    %v683 = vpop.f32.mrf.mxu0
    %v684 = vadd.f32 0.0, %v683
    %685 = vmatmul.f32.gmra.mxu0 %v619
    %v686 = vpop.f32.mrf.mxu0
    %v687 = vadd.f32 0.0, %v686
    %688 = vmatmul.f32.gmra.mxu0 %v620
    %v689 = vpop.f32.mrf.mxu0
    %v690 = vadd.f32 0.0, %v689
    %691 = vmatmul.f32.gmra.mxu0 %v621
    %v692 = vpop.f32.mrf.mxu0
    %v693 = vadd.f32 0.0, %v692
    %694 = vdwg.mxu0
    %695 = vmatpush.msra.mxu0 %v637
    %696 = vmatpush.msra.mxu0 %v636
    %697 = vmatpush.msra.mxu0 %v635
    %698 = vmatpush.msra.mxu0 %v634
    %699 = vmatpush.msra.mxu0 %v633
    %700 = vmatpush.msra.mxu0 %v632
    %701 = vmatpush.msra.mxu0 %v631
    %702 = vmatpush.msra.mxu0 %v630
    %703 = vmatpush.msra.mxu0 %v629
    %704 = vmatpush.msra.mxu0 %v628
    %705 = vmatpush.msra.mxu0 %v627
    %706 = vmatpush.msra.mxu0 %v626
    %707 = vmatpush.msra.mxu0 %v625
    %708 = vmatpush.msra.mxu0 %v624
    %709 = vmatpush.msra.mxu0 %v623
    %710 = vmatpush.msra.mxu0 %v622
    %711 = vmatmul.f32.gmra.mxu0 %v541
    %v712 = vpop.f32.mrf.mxu0
    %v713 = vadd.f32 %v672, %v712
    %714 = vmatmul.f32.gmra.mxu0 %v542
    %v715 = vpop.f32.mrf.mxu0
    %v716 = vadd.f32 %v675, %v715
    %717 = vmatmul.f32.gmra.mxu0 %v543
    %v718 = vpop.f32.mrf.mxu0
    %v719 = vadd.f32 %v678, %v718
    %720 = vmatmul.f32.gmra.mxu0 %v544
    %v721 = vpop.f32.mrf.mxu0
    %v722 = vadd.f32 %v681, %v721
    %723 = vmatmul.f32.gmra.mxu0 %v545
    %v724 = vpop.f32.mrf.mxu0
    %v725 = vadd.f32 %v684, %v724
    %726 = vmatmul.f32.gmra.mxu0 %v546
    %v727 = vpop.f32.mrf.mxu0
    %v728 = vadd.f32 %v687, %v727
    %729 = vmatmul.f32.gmra.mxu0 %v547
    %v730 = vpop.f32.mrf.mxu0
    %v731 = vadd.f32 %v690, %v730
    %732 = vmatmul.f32.gmra.mxu0 %v548
    %v733 = vpop.f32.mrf.mxu0
    %v734 = vadd.f32 %v693, %v733
    %735 = vdwg.mxu0
    %v736 = vld [vmem:[%s10] sm:$0x1]
    %v738 = vperm.slane %v736, 0
    %v740 = vadd.f32 %v713, %v738
    %v741 = vadd.f32 %v716, %v738
    %v742 = vadd.f32 %v719, %v738
    %v743 = vadd.f32 %v722, %v738
    %v744 = vadd.f32 %v725, %v738
    %v745 = vadd.f32 %v728, %v738
    %v746 = vadd.f32 %v731, %v738
    %v747 = vadd.f32 %v734, %v738
    %748 = vmax.xlane.f32.xlu0 %v740
    %v749 = vpop.xlane.xlu0 %748
    %750 = vmax.xlane.f32.xlu0 %v741
    %v751 = vpop.xlane.xlu0 %750
    %752 = vmax.xlane.f32.xlu0 %v742
    %v753 = vpop.xlane.xlu0 %752
    %754 = vmax.xlane.f32.xlu0 %v743
    %v755 = vpop.xlane.xlu0 %754
    %756 = vmax.xlane.f32.xlu0 %v744
    %v757 = vpop.xlane.xlu0 %756
    %758 = vmax.xlane.f32.xlu0 %v745
    %v759 = vpop.xlane.xlu0 %758
    %760 = vmax.xlane.f32.xlu0 %v746
    %v761 = vpop.xlane.xlu0 %760
    %762 = vmax.xlane.f32.xlu0 %v747
    %v763 = vpop.xlane.xlu0 %762
    %v764 = vsub.f32 %v740, %v749
    %v765 = vsub.f32 %v741, %v751
    %v766 = vsub.f32 %v742, %v753
    %v767 = vsub.f32 %v743, %v755
    %v768 = vsub.f32 %v744, %v757
    %v769 = vsub.f32 %v745, %v759
    %v770 = vsub.f32 %v746, %v761
    %v771 = vsub.f32 %v747, %v763
    %v772 = vmul.f32 %v764, 1.442695
    %v773 = vpow.pop %v772
    %v774 = vmul.f32 %v765, 1.442695
    %v775 = vpow.pop %v774
    %v776 = vmul.f32 %v766, 1.442695
    %v777 = vpow.pop %v776
    %v778 = vmul.f32 %v767, 1.442695
    %v779 = vpow.pop %v778
    %v780 = vmul.f32 %v768, 1.442695
    %v781 = vpow.pop %v780
    %v782 = vmul.f32 %v769, 1.442695
    %v783 = vpow.pop %v782
    %v784 = vmul.f32 %v770, 1.442695
    %v785 = vpow.pop %v784
    %v786 = vmul.f32 %v771, 1.442695
    %v787 = vpow.pop %v786
    %788 = vadd.xlane.f32.xlu0 %v773
    %v789 = vpop.xlane.xlu0 %788
    %790 = vadd.xlane.f32.xlu0 %v775
    %v791 = vpop.xlane.xlu0 %790
    %792 = vadd.xlane.f32.xlu0 %v777
    %v793 = vpop.xlane.xlu0 %792
    %794 = vadd.xlane.f32.xlu0 %v779
    %v795 = vpop.xlane.xlu0 %794
    %796 = vadd.xlane.f32.xlu0 %v781
    %v797 = vpop.xlane.xlu0 %796
    %798 = vadd.xlane.f32.xlu0 %v783
    %v799 = vpop.xlane.xlu0 %798
    %800 = vadd.xlane.f32.xlu0 %v785
    %v801 = vpop.xlane.xlu0 %800
    %802 = vadd.xlane.f32.xlu0 %v787
    %v803 = vpop.xlane.xlu0 %802
    %v804 = vlog2.pop %v789
    %v805 = vmul.f32 %v804, 0.6931472
    %v806 = vlog2.pop %v791
    %v807 = vmul.f32 %v806, 0.6931472
    %v808 = vlog2.pop %v793
    %v809 = vmul.f32 %v808, 0.6931472
    %v810 = vlog2.pop %v795
    %v811 = vmul.f32 %v810, 0.6931472
    %v812 = vlog2.pop %v797
    %v813 = vmul.f32 %v812, 0.6931472
    %v814 = vlog2.pop %v799
    %v815 = vmul.f32 %v814, 0.6931472
    %v816 = vlog2.pop %v801
    %v817 = vmul.f32 %v816, 0.6931472
    %v818 = vlog2.pop %v803
    %v819 = vmul.f32 %v818, 0.6931472
    %v820 = vsub.f32 %v764, %v805
    %v821 = vsub.f32 %v765, %v807
    %v822 = vsub.f32 %v766, %v809
    %v823 = vsub.f32 %v767, %v811
    %v824 = vsub.f32 %v768, %v813
    %v825 = vsub.f32 %v769, %v815
    %v826 = vsub.f32 %v770, %v817
    %v827 = vsub.f32 %v771, %v819
    %828 = vst [vmem:[#allocation14] sm:$0xff] %v820
    %829 = vst [vmem:[#allocation14 + $0x8] sm:$0xff] %v821
    %830 = vst [vmem:[#allocation14 + $0x10] sm:$0xff] %v822
    %831 = vst [vmem:[#allocation14 + $0x18] sm:$0xff] %v823
    %832 = vst [vmem:[#allocation14 + $0x20] sm:$0xff] %v824
    %833 = vst [vmem:[#allocation14 + $0x28] sm:$0xff] %v825
    %834 = vst [vmem:[#allocation14 + $0x30] sm:$0xff] %v826
    %835 = vst [vmem:[#allocation14 + $0x38] sm:$0xff] %v827
    // Predicated region
    $region66: #{tpu_custom_call.1} parent=1 // pred_check
      _
    $region67: #{tpu_custom_call.1} parent=1 // pred_check_branch
      %837 = sbr.rel (0) target = $region69
    $region68: #{tpu_custom_call.1} parent=1 // pred_region
      %839 = vsyncadd [#allocation7], 0
      %s840 = sshll.u32 [#allocation14], 4
      %s841 = int_to_ptr.vmem [resolvable:$true] %s840
      %s842 = sshll.u32 %s11, 4
      %s843 = int_to_ptr.hbm [resolvable:$true] %s842
      %848 = dma.vmem_to_hbm [thread:$0]  %s841, 1024, %s843, [#allocation7], 128, 128, 8
    $region69: #{tpu_custom_call.1} parent=1 // pred_fallthru
      _
    // Predicated region
    $region70: #{tpu_custom_call.1} parent=1 // pred_check
      _
    $region71: #{tpu_custom_call.1} parent=1 // pred_check_branch
      %850 = sbr.rel (0) target = $region73
    $region72: #{tpu_custom_call.1} parent=1 // pred_region
      %852 = vsyncadd [#allocation16], 0
      %s854 = sshll.u32 [#allocation15], 4
      %s855 = int_to_ptr.vmem [resolvable:$true] %s854
      %s856 = sshll.u32 %s12, 4
      %s857 = int_to_ptr.hbm [resolvable:$true] %s856
      %859 = dma.vmem_to_hbm [thread:$0]  %s855, 128, %s857, [#allocation16]
    $region73: #{tpu_custom_call.1} parent=1 // pred_fallthru
      _
    // Predicated region
    $region74: #{tpu_custom_call.1} parent=1 // pred_check
      _
    $region75: #{tpu_custom_call.1} parent=1 // pred_check_branch
      %861 = sbr.rel (0) target = $region77
    $region76: #{tpu_custom_call.1} parent=1 // pred_region
      %863 = dma.done [#allocation7], 1024
    $region77: #{tpu_custom_call.1} parent=1 // pred_fallthru
      _
    // Predicated region
    $region78: #{tpu_custom_call.1} parent=1 // pred_check
      _
    $region79: #{tpu_custom_call.1} parent=1 // pred_check_branch
      %865 = sbr.rel (0) target = $region81
    $region80: #{tpu_custom_call.1} parent=1 // pred_region
      %867 = dma.done [#allocation16], 128
    $region81: #{tpu_custom_call.1} parent=1 // pred_fallthru
      _
    %868 = vsyncpa [#allocation6], 1
    %869 = vsyncpa [#allocation9], 1
    %870 = vsyncpa [#allocation12], 1
    %871 = vsyncpa [#allocation7], 1
    %872 = vsyncpa [#allocation16], 1

</llo_original>
